<compile_context>
chip_gen: v5e
topology: v5e:2x2
jax: 0.10.0
libtpu: 0.0.40
codegen_flags: <defaults>
</compile_context>

<pallas_src>
import jax
import jax.numpy as jnp
from jax.experimental import pallas as pl
from jax.experimental.pallas import tpu as pltpu


def _round_up(x, m):
    return ((x + m - 1) // m) * m


def _fused_proj_kernel(x_ref, w_ref, b_ref, o_ref):
    # One MXU matmul over the block-diagonal weight (bf16 in, f32 accumulate),
    # one lane-dense bias add, one unmasked full-width (tb, 2E) store.
    o_ref[...] = (
        jnp.dot(x_ref[...], w_ref[...], preferred_element_type=jnp.float32)
        + b_ref[...]
    )


def fused_contrastive_projection(x_cat, w_blk, b_cat, *, block_b=1024):
    """x_cat: (B, Ft+Fp) bf16 activations (txt || ppg along lanes).
    w_blk: (Ft+Fp, 2*E) bf16 block-diagonal weight.
    b_cat: (1, 2*E) f32 fused bias.
    Returns the fused (B, 2*E) f32 embeddings."""
    B, K = x_cat.shape
    N = w_blk.shape[1]

    # HBM-bandwidth-bound kernel: use a large batch tile (~512-1024 rows).
    tb = min(block_b, B)
    # If that collapses the grid to a single step but B is big enough that
    # splitting keeps tiles at/above the mem-bound sweet spot, use >=2 steps
    # so the "parallel" axis can shard across v7x's 2 TensorCores.
    if pl.cdiv(B, tb) == 1 and B >= 1024:
        tb = _round_up(pl.cdiv(B, 2), 8)
    grid = (pl.cdiv(B, tb),)

    cost = pl.CostEstimate(
        flops=2 * B * K * N,
        transcendentals=0,
        bytes_accessed=2 * (B * K + K * N) + 4 * (N + B * N),
    )

    # Explicit scoped-VMEM limit: double-buffered in/out tiles count against
    # it and v5e's default is only 16 MiB.
    est_vmem = 3 * (tb * K * 2) + 2 * (K * N * 2) + 3 * (tb * N * 4) + (1 << 20)
    vmem_limit = int(min(max(est_vmem, 16 << 20), 48 << 20))

    return pl.pallas_call(
        _fused_proj_kernel,
        out_shape=jax.ShapeDtypeStruct((B, N), jnp.float32),
        grid=grid,
        in_specs=[
            pl.BlockSpec((tb, K), lambda i: (i, 0)),  # activations (streamed)
            pl.BlockSpec((K, N), lambda i: (0, 0)),   # block-diag weight (resident)
            pl.BlockSpec((1, N), lambda i: (0, 0)),   # fused bias (resident)
        ],
        out_specs=pl.BlockSpec((tb, N), lambda i: (i, 0)),
        compiler_params=pltpu.CompilerParams(
            dimension_semantics=("parallel",),  # batch tiles shard across TCs
            vmem_limit_bytes=vmem_limit,
        ),
        cost_estimate=cost,
    )(x_cat, w_blk, b_cat)


class ContrastiveModelPallas:
    """JAX/Pallas port of ContrastiveModel: two linear projections into a
    shared embedding space, fused into a single block-diagonal matmul kernel."""

    def __init__(self, sentence_feature_dim, ppg_feature_dim, embed_dim, key):
        self.Ft = sentence_feature_dim
        self.Fp = ppg_feature_dim
        self.E = embed_dim

        k1, k2, k3, k4 = jax.random.split(key, 4)
        # Match nn.Linear default init: U(-1/sqrt(fan_in), 1/sqrt(fan_in)).
        txt_bound = 1.0 / jnp.sqrt(jnp.float32(sentence_feature_dim))
        ppg_bound = 1.0 / jnp.sqrt(jnp.float32(ppg_feature_dim))
        # f32 master params, stored pre-transposed (in_features, embed_dim).
        self.txt_w_t = jax.random.uniform(
            k1, (sentence_feature_dim, embed_dim), jnp.float32,
            minval=-txt_bound, maxval=txt_bound)
        self.txt_b = jax.random.uniform(
            k2, (1, embed_dim), jnp.float32, minval=-txt_bound, maxval=txt_bound)
        self.ppg_w_t = jax.random.uniform(
            k3, (ppg_feature_dim, embed_dim), jnp.float32,
            minval=-ppg_bound, maxval=ppg_bound)
        self.ppg_b = jax.random.uniform(
            k4, (1, embed_dim), jnp.float32, minval=-ppg_bound, maxval=ppg_bound)

        # Kernel-side fused params.
        # Block-diagonal (Ft+Fp, 2E) weight: one MXU pass yields the full
        # 128-lane output tile (zero-FLOPs in the off-diagonal halves are free
        # in a mem-bound kernel). Cast to bf16 once here.
        w_blk = jnp.zeros((self.Ft + self.Fp, 2 * self.E), jnp.float32)
        w_blk = w_blk.at[: self.Ft, : self.E].set(self.txt_w_t)
        w_blk = w_blk.at[self.Ft:, self.E:].set(self.ppg_w_t)
        self.w_blk = w_blk.astype(jnp.bfloat16)
        # Single lane-dense (1, 2E) bias, kept in f32.
        self.b_cat = jnp.concatenate([self.txt_b, self.ppg_b], axis=-1)

    def __call__(self, txt_feature, ppg_feature):
        # f32 -> bf16 cast + lane concat fuse into one XLA op upstream of the
        # kernel: one wide input DMA stream per grid step instead of two
        # narrow padded ones.
        txt = jnp.asarray(txt_feature, jnp.float32).astype(jnp.bfloat16)
        ppg = jnp.asarray(ppg_feature, jnp.float32).astype(jnp.bfloat16)
        x_cat = jnp.concatenate([txt, ppg], axis=-1)
        out = fused_contrastive_projection(x_cat, self.w_blk, self.b_cat)
        # TODO(synk): if the downstream contrastive loss can consume the fused
        # (B, 2E) layout, return `out` directly and skip this split (saves one
        # extra memory pass on a memory-bound pipeline).
        E = self.E
        return out[:, :E], out[:, E:]


if __name__ == "__main__":
    key = jax.random.PRNGKey(0)
    k_params, k_txt, k_ppg = jax.random.split(key, 3)

    batch = 8
    sentence_feature_dim = 32
    ppg_feature_dim = 16
    embed_dim = 64

    model = ContrastiveModelPallas(
        sentence_feature_dim, ppg_feature_dim, embed_dim, k_params)

    txt_feature = jax.random.normal(k_txt, (batch, sentence_feature_dim),
                                    dtype=jnp.float32)
    ppg_feature = jax.random.normal(k_ppg, (batch, ppg_feature_dim),
                                    dtype=jnp.float32)

    txt_embed, ppg_embed = model(txt_feature, ppg_feature)
    jax.block_until_ready((txt_embed, ppg_embed))

    assert txt_embed.shape == (batch, embed_dim)
    assert ppg_embed.shape == (batch, embed_dim)

    # Reference 1: same bf16-input / f32-accumulate math as the kernel.
    x_cat_bf16 = jnp.concatenate(
        [txt_feature.astype(jnp.bfloat16), ppg_feature.astype(jnp.bfloat16)],
        axis=-1)
    ref_fused = jnp.dot(x_cat_bf16, model.w_blk,
                        preferred_element_type=jnp.float32) + model.b_cat
    assert jnp.allclose(txt_embed, ref_fused[:, :embed_dim], atol=1e-5, rtol=1e-5)
    assert jnp.allclose(ppg_embed, ref_fused[:, embed_dim:], atol=1e-5, rtol=1e-5)

    # Reference 2: full-f32 PyTorch-equivalent math (loose tolerance for the
    # documented bf16-cast path).
    ref_txt_f32 = txt_feature @ model.txt_w_t + model.txt_b
    ref_ppg_f32 = ppg_feature @ model.ppg_w_t + model.ppg_b
    assert jnp.allclose(txt_embed, ref_txt_f32, atol=3e-2, rtol=3e-2)
    assert jnp.allclose(ppg_embed, ref_ppg_f32, atol=3e-2, rtol=3e-2)

    print("KERNEL_OK")
</pallas_src>

<mosaic_0001>
module attributes {stable_mosaic.version = 11 : i64} {
  func.func @_fused_proj_kernel(%arg0: i32, %arg1: memref<8x48xbf16, #tpu.memory_space<vmem>>, %arg2: memref<48x128xbf16, #tpu.memory_space<vmem>>, %arg3: memref<1x128xf32, #tpu.memory_space<vmem>>, %arg4: memref<8x128xf32, #tpu.memory_space<vmem>>) attributes {dimension_semantics = [#tpu.dimension_semantics<parallel>], iteration_bounds = array<i64: 1>, scalar_prefetch = 0 : i64, scratch_operands = 0 : i64, tpu.core_type = #tpu.core_type<tc>, window_params = [{transform_indices = @transform_0, window_bounds = array<i64: 8, 48>}, {pipeline_mode = #tpu.pipeline_mode<synchronous>, transform_indices = @transform_1, window_bounds = array<i64: 48, 128>}, {pipeline_mode = #tpu.pipeline_mode<synchronous>, transform_indices = @transform_2, window_bounds = array<i64: 1, 128>}, {transform_indices = @transform_3, window_bounds = array<i64: 8, 128>}]} {
    %c0 = arith.constant 0 : index
    %c0_0 = arith.constant 0 : index
    %0 = vector.load %arg1[%c0, %c0_0] : memref<8x48xbf16, #tpu.memory_space<vmem>>, vector<8x48xbf16>
    %c0_1 = arith.constant 0 : index
    %c0_2 = arith.constant 0 : index
    %1 = vector.load %arg2[%c0_1, %c0_2] : memref<48x128xbf16, #tpu.memory_space<vmem>>, vector<48x128xbf16>
    %cst = arith.constant dense<0.000000e+00> : vector<8x128xf32>
    %2 = tpu.matmul %0, %1, %cst {dimension_numbers = #tpu.dot_dimension_numbers<[1], [0], [0], [1], [0, 0, 1, 1], [], []>} : vector<8x48xbf16>, vector<48x128xbf16>, vector<8x128xf32> -> vector<8x128xf32>
    %c0_3 = arith.constant 0 : index
    %c0_4 = arith.constant 0 : index
    %3 = vector.load %arg3[%c0_3, %c0_4] : memref<1x128xf32, #tpu.memory_space<vmem>>, vector<1x128xf32>
    %4 = vector.broadcast %3 : vector<1x128xf32> to vector<8x128xf32>
    %5 = arith.addf %2, %4 : vector<8x128xf32>
    %c0_5 = arith.constant 0 : index
    %c0_6 = arith.constant 0 : index
    %6 = vector.load %arg4[%c0_5, %c0_6] : memref<8x128xf32, #tpu.memory_space<vmem>>, vector<8x128xf32>
    tpu.vector_store %arg4[%c0_5, %c0_6], %5 {strides = array<i32>} : memref<8x128xf32, #tpu.memory_space<vmem>>, vector<8x128xf32>,
    return
  }
  func.func @transform_0(%arg0: i32) -> (i32, i32) {
    %c0_i32 = arith.constant 0 : i32
    %c0_i32_0 = arith.constant 0 : i32
    return %arg0, %c0_i32 : i32, i32
  }
  func.func @transform_1(%arg0: i32) -> (i32, i32) {
    %c0_i32 = arith.constant 0 : i32
    %c0_i32_0 = arith.constant 0 : i32
    %c0_i32_1 = arith.constant 0 : i32
    return %c0_i32, %c0_i32_0 : i32, i32
  }
  func.func @transform_2(%arg0: i32) -> (i32, i32) {
    %c0_i32 = arith.constant 0 : i32
    %c0_i32_0 = arith.constant 0 : i32
    %c0_i32_1 = arith.constant 0 : i32
    return %c0_i32, %c0_i32_0 : i32, i32
  }
  func.func @transform_3(%arg0: i32) -> (i32, i32) {
    %c0_i32 = arith.constant 0 : i32
    %c0_i32_0 = arith.constant 0 : i32
    return %arg0, %c0_i32 : i32, i32
  }
}

</mosaic_0001>

<llo_original>
// kernel: tpu_custom_call.1
$region0: #{tpu_custom_call.1}
  #allocation0 [shape = 'u32[]', space=smem, size = 0x4, offset = 0x4, fixed_abs, tag = 'smem constant byte address 0x4 - core index']
  #allocation1 [shape = 'u32[72,128]{1,0:T(1,128)}', space=vmem, size = 0x9000, scoped, tag = 'internal scratch']
  %s0 = inlined_call_operand.hbm [shape: bf16[8,48], index: 0, kind: input, shape index: {}]
  %s1 = inlined_call_operand.hbm [shape: bf16[48,128], index: 1, kind: input, shape index: {}]
  %s2 = inlined_call_operand.vmem [shape: f32[1,128], index: 2, kind: input, shape index: {}]
  %s3 = inlined_call_operand.hbm [shape: f32[8,128], index: 3, kind: output, shape index: {}]
  %s4 = sld [smem:[#allocation0]]
  $region30: #{tpu_custom_call.1} parent=0
    _
  %s6 = ssub.s32 1, %s4
  %s7 = scalar_select 0, %s6, %s4
  $region1: #{tpu_custom_call.1} parent=0
    #allocation2 [shape = 'u8[2048]{0}', space=vmem, size = 0x800, scoped, tag = 'input window, operand 0, single buffered']
    #allocation3 [shape = 's32[1]{0}', space=sflag, size = 0x4, scoped, tag = 'scoped memory for tpu_custom_call.1']
    #allocation4 [shape = 's32[1]{0}', space=sflag, size = 0x4, scoped, tag = 'scoped memory for tpu_custom_call.1']
    #allocation5 [shape = 'u8[12288]{0}', space=vmem, size = 0x3000, scoped, tag = 'input window, operand 1, single buffered']
    #allocation6 [shape = 's32[1]{0}', space=sflag, size = 0x4, scoped, tag = 'scoped memory for tpu_custom_call.1']
    #allocation7 [shape = 'u8[4096]{0}', space=vmem, size = 0x1000, scoped, tag = 'output window, operand 0, single buffered']
    %8 = vsyncpa [#allocation3], 0
    %9 = vsyncpa [#allocation6], 0
    %10 = vsyncpa [#allocation4], 0
    // Predicated region
    $region2: #{tpu_custom_call.1} parent=1 // pred_check
      _
    $region3: #{tpu_custom_call.1} parent=1 // pred_check_branch
      %12 = sbr.rel (0) target = $region5
    $region4: #{tpu_custom_call.1} parent=1 // pred_region
      %14 = vsyncadd [#allocation3], 0
      %s16 = sshll.u32 %s0, 4
      %s17 = int_to_ptr.hbm [resolvable:$true] %s16
      %s18 = sshll.u32 [#allocation2], 4
      %s19 = int_to_ptr.vmem [resolvable:$true] %s18
      %21 = dma.hbm_to_vmem [thread:$0]  %s17, 64, %s19, [#allocation3]
    $region5: #{tpu_custom_call.1} parent=1 // pred_fallthru
      _
    // Predicated region
    $region6: #{tpu_custom_call.1} parent=1 // pred_check
      _
    $region7: #{tpu_custom_call.1} parent=1 // pred_check_branch
      %23 = sbr.rel (0) target = $region9
    $region8: #{tpu_custom_call.1} parent=1 // pred_region
      %25 = vsyncadd [#allocation6], 0
      %s26 = sshll.u32 %s1, 4
      %s27 = int_to_ptr.hbm [resolvable:$true] %s26
      %s28 = sshll.u32 [#allocation5], 4
      %s29 = int_to_ptr.vmem [resolvable:$true] %s28
      %34 = dma.hbm_to_vmem [thread:$0]  %s27, 384, %s29, [#allocation6], 64, 64, 4
    $region9: #{tpu_custom_call.1} parent=1 // pred_fallthru
      _
    // Predicated region
    $region10: #{tpu_custom_call.1} parent=1 // pred_check
      _
    $region11: #{tpu_custom_call.1} parent=1 // pred_check_branch
      %36 = sbr.rel (0) target = $region13
    $region12: #{tpu_custom_call.1} parent=1 // pred_region
      _
    $region13: #{tpu_custom_call.1} parent=1 // pred_fallthru
      _
    // Predicated region
    $region14: #{tpu_custom_call.1} parent=1 // pred_check
      _
    $region15: #{tpu_custom_call.1} parent=1 // pred_check_branch
      %38 = sbr.rel (0) target = $region17
    $region16: #{tpu_custom_call.1} parent=1 // pred_region
      %40 = dma.done [#allocation3], 64
    $region17: #{tpu_custom_call.1} parent=1 // pred_fallthru
      _
    // Predicated region
    $region18: #{tpu_custom_call.1} parent=1 // pred_check
      _
    $region19: #{tpu_custom_call.1} parent=1 // pred_check_branch
      %42 = sbr.rel (0) target = $region21
    $region20: #{tpu_custom_call.1} parent=1 // pred_region
      %44 = dma.done [#allocation6], 384
    $region21: #{tpu_custom_call.1} parent=1 // pred_fallthru
      _
    %v46 = vld [vmem:[#allocation2] sm:$0xf]
    %v47 = vld [vmem:[#allocation5] sm:$0xf]
    %v48 = vld [vmem:[#allocation5 + $0x4] sm:$0xf]
    %v49 = vld [vmem:[#allocation5 + $0x8] sm:$0xf]
    %v50 = vld [vmem:[#allocation5 + $0xc] sm:$0xf]
    %v51 = vld [vmem:[#allocation5 + $0x10] sm:$0xf]
    %v52 = vld [vmem:[#allocation5 + $0x14] sm:$0xf]
    %v53 = vld [vmem:[%s2] sm:$0x1]
    %v55 = vperm.slane %v53, 0
    %v63 = vunpack.c.l.b16 %v47
    %v64 = vunpack.c.l.b16 %v48
    %v65 = vunpack.c.l.b16 %v49
    %v66 = vunpack.c.l.b16 %v50
    %v67 = vunpack.c.l.b16 %v51
    %v68 = vunpack.c.l.b16 %v52
    %v69 = vpack.c.b16 %v64, %v63
    %v70 = vpack.c.b16 %v66, %v65
    %v71 = vpack.c.b16 %v68, %v67
    %vm75 = vcmask 392192
    %v77 = vsel %vm75, %v46, 0
    %79 = vmatpush.bf16.msra.mxu0 0
    %80 = vmatpush.bf16.msra.mxu0 0
    %81 = vmatpush.bf16.msra.mxu0 0
    %82 = vmatpush.bf16.msra.mxu0 0
    %83 = vmatpush.bf16.msra.mxu0 0
    %84 = vmatpush.bf16.msra.mxu0 %v71
    %85 = vmatpush.bf16.msra.mxu0 %v70
    %86 = vmatpush.bf16.msra.mxu0 %v69
    %87 = vmatmul.bf16.gmra.mxu0 %v77
    %v88 = vpop.f32.mrf.mxu0
    %v89 = vadd.f32 %v55, %v88
    %v90 = vpop.f32.mrf.mxu0
    %91 = vdwg.mxu0
    %92 = vst [vmem:[#allocation7] sm:$0xff] %v89
    // Predicated region
    $region22: #{tpu_custom_call.1} parent=1 // pred_check
      _
    $region23: #{tpu_custom_call.1} parent=1 // pred_check_branch
      %94 = sbr.rel (0) target = $region25
    $region24: #{tpu_custom_call.1} parent=1 // pred_region
      %96 = vsyncadd [#allocation4], 0
      %s98 = sshll.u32 [#allocation7], 4
      %s99 = int_to_ptr.vmem [resolvable:$true] %s98
      %s100 = sshll.u32 %s3, 4
      %s101 = int_to_ptr.hbm [resolvable:$true] %s100
      %103 = dma.vmem_to_hbm [thread:$0]  %s99, 128, %s101, [#allocation4]
    $region25: #{tpu_custom_call.1} parent=1 // pred_fallthru
      _
    // Predicated region
    $region26: #{tpu_custom_call.1} parent=1 // pred_check
      _
    $region27: #{tpu_custom_call.1} parent=1 // pred_check_branch
      %105 = sbr.rel (0) target = $region29
    $region28: #{tpu_custom_call.1} parent=1 // pred_region
      %107 = dma.done [#allocation4], 128
    $region29: #{tpu_custom_call.1} parent=1 // pred_fallthru
      _
    %108 = vsyncpa [#allocation3], 1
    %109 = vsyncpa [#allocation6], 1
    %110 = vsyncpa [#allocation4], 1

</llo_original>
